<compile_context>
chip_gen: v7x
topology: tpu7x:2x2x1
jax: 0.10.0
libtpu: 0.0.40
codegen_flags: <defaults>
</compile_context>

<pallas_src>
import jax
import jax.numpy as jnp
import numpy as np
from jax import lax
from jax.experimental import pallas as pl
from jax.experimental.pallas import tpu as pltpu


def _make_kernel(H, W, C, L):
    """Fused block on a (C, L) slab, L = N*H*W lanes (single grid step)."""

    def kernel(x_ref, m_ref, wc_ref, bc_ref, wfu_ref, bo_ref, out_ref):
        x = x_ref[...]                                  # (C, L) f32

        def im2col(v):
            # 9 taps as static lane rolls (XLU slot) * precomputed border masks
            # (VPU), sublane-stacked into one (9C, L) MXU operand.
            slabs = []
            for dy in range(3):
                for dx in range(3):
                    off = (dy - 1) * W + (dx - 1)
                    k = dy * 3 + dx
                    s = v if off == 0 else pltpu.roll(v, shift=(-off) % L, axis=1)
                    if k != 4:                          # centre tap needs no mask
                        s = s * m_ref[k]                # (C, L) * (C, L)
                    slabs.append(s)
            return jnp.concatenate(slabs, axis=0)       # (9C, L)

        # --- MXU launch 1: conv3x3_e(x) and conv1x1_t(x) share one dot -------
        col_x = im2col(x)                                # (9C, L)
        y = jnp.dot(wc_ref[...], col_x,
                    preferred_element_type=jnp.float32) + bc_ref[...]   # (2C, L)
        e = jax.nn.sigmoid(y[:C]) * x                    # e-branch
        t1 = jnp.maximum(y[C:], 0.0)                     # relu(conv1x1(x)+bt1)

        # --- MXU launch 2: folded (wft . conv3x3_t)(t1) + wfe . e ------------
        col2 = jnp.concatenate([im2col(t1), e], axis=0)  # (10C, L)
        out = (jnp.dot(wfu_ref[...], col2,
                       preferred_element_type=jnp.float32)
               + bo_ref[...] + x)                        # + residual
        out_ref[...] = out.astype(out_ref.dtype)

    return kernel


def deep_feature_extraction_block(x_nchw, params):
    """x_nchw: (N, C, H, W) float32 (PyTorch layout). Returns (N, C, H, W)."""
    N, C, H, W = x_nchw.shape
    HW = H * W
    L = N * HW
    assert L % 128 == 0, "lane axis should be a multiple of 128"

    # (N,C,H,W) -> (C, N*H*W): batch folded into the lane axis, one kernel step.
    x_flat = jnp.transpose(x_nchw, (1, 0, 2, 3)).reshape(C, L)

    # ---------------- trace-time weight preparation ----------------
    we = params["we"]                                   # (C, C, 3, 3) OIHW
    wt1 = params["wt1"][:, :, 0, 0]                     # (C, C)
    wt2 = params["wt2"]                                 # (C, C, 3, 3)
    wf = params["wf"][:, :, 0, 0]                       # (C, 2C)
    wfe, wft = wf[:, :C], wf[:, C:]                     # concat order is [e, t]

    # im2col-flattened e-branch 3x3: tap-major (k = dy*3+dx), Cin fastest.
    we_flat = jnp.transpose(we, (0, 2, 3, 1)).reshape(C, 9 * C)
    # t-branch conv1x1 placed on the centre-tap block so it shares the same dot.
    wt1_big = jnp.zeros((C, 9 * C), jnp.float32).at[:, 4 * C:5 * C].set(wt1)
    w_combo = jnp.concatenate([we_flat, wt1_big], axis=0)               # (2C, 9C)
    b_combo = jnp.concatenate([params["be"], params["bt1"]]).reshape(2 * C, 1)

    # Fold the fusion's t-half into the second 3x3 (conv3x3 -> 1x1 is linear).
    wt2f = jnp.einsum("oc,cihw->oihw", wft, wt2)                        # (C,C,3,3)
    wt2f_flat = jnp.transpose(wt2f, (0, 2, 3, 1)).reshape(C, 9 * C)
    w_fused = jnp.concatenate([wt2f_flat, wfe], axis=1)                 # (C, 10C)
    b_out = (params["bf"] + wft @ params["bt2"]).reshape(C, 1)

    # Precomputed per-tap border masks from per-image position: also kill roll
    # wrap-around and cross-image taps.  Shape (9, C, L), f32.
    pos = np.arange(L) % HW
    row, col = pos // W, pos % W
    m = np.ones((9, L), np.float32)
    for dy in range(3):
        for dx in range(3):
            oy, ox = dy - 1, dx - 1
            ok = ((row + oy >= 0) & (row + oy < H)
                  & (col + ox >= 0) & (col + ox < W))
            m[dy * 3 + dx] = ok.astype(np.float32)
    masks = jnp.asarray(np.ascontiguousarray(
        np.broadcast_to(m[:, None, :], (9, C, L))))

    vmem = pl.BlockSpec(memory_space=pltpu.MemorySpace.VMEM)
    out_flat = pl.pallas_call(
        _make_kernel(H, W, C, L),
        out_shape=jax.ShapeDtypeStruct((C, L), x_nchw.dtype),
        in_specs=[vmem] * 6,
        out_specs=vmem,
    )(x_flat, masks, w_combo, b_combo, w_fused, b_out)

    return jnp.transpose(out_flat.reshape(C, N, H, W), (1, 0, 2, 3))


def _ref_forward(x, p):
    """Pure-JAX NCHW reference mirroring the PyTorch module semantics."""
    def conv(z, w, b, pad):
        y = lax.conv_general_dilated(
            z, w, window_strides=(1, 1), padding=pad,
            dimension_numbers=("NCHW", "OIHW", "NCHW"))
        return y + b[None, :, None, None]
    e = jax.nn.sigmoid(conv(x, p["we"], p["be"], "SAME")) * x
    t1 = jax.nn.relu(conv(x, p["wt1"], p["bt1"], "VALID"))
    t = conv(t1, p["wt2"], p["bt2"], "SAME")
    fused = jnp.concatenate([e, t], axis=1)
    out = conv(fused, p["wf"], p["bf"], "VALID")
    return out + x


def make_params(dim, key):
    ks = jax.random.split(key, 8)
    s = 0.1
    return {
        "we":  s * jax.random.normal(ks[0], (dim, dim, 3, 3), jnp.float32),
        "be":  s * jax.random.normal(ks[1], (dim,), jnp.float32),
        "wt1": s * jax.random.normal(ks[2], (dim, dim, 1, 1), jnp.float32),
        "bt1": s * jax.random.normal(ks[3], (dim,), jnp.float32),
        "wt2": s * jax.random.normal(ks[4], (dim, dim, 3, 3), jnp.float32),
        "bt2": s * jax.random.normal(ks[5], (dim,), jnp.float32),
        "wf":  s * jax.random.normal(ks[6], (dim, 2 * dim, 1, 1), jnp.float32),
        "bf":  s * jax.random.normal(ks[7], (dim,), jnp.float32),
    }


if __name__ == "__main__":
    key = jax.random.PRNGKey(0)
    kx, kp = jax.random.split(key)

    N, C, H, W = 2, 4, 16, 16                     # PyTorch NCHW shapes
    x = jax.random.normal(kx, (N, C, H, W), jnp.float32)
    params = make_params(C, kp)

    out = jax.block_until_ready(deep_feature_extraction_block(x, params))
    ref = jax.block_until_ready(_ref_forward(x, params))
    np.testing.assert_allclose(np.asarray(out), np.asarray(ref),
                               rtol=1e-4, atol=1e-4)

    print("KERNEL_OK")
</pallas_src>

<mosaic_0001>
module attributes {stable_mosaic.version = 11 : i64} {
  func.func @kernel(%arg0: memref<4x512xf32, #tpu.memory_space<vmem>>, %arg1: memref<9x4x512xf32, #tpu.memory_space<vmem>>, %arg2: memref<8x36xf32, #tpu.memory_space<vmem>>, %arg3: memref<8x1xf32, #tpu.memory_space<vmem>>, %arg4: memref<4x40xf32, #tpu.memory_space<vmem>>, %arg5: memref<4x1xf32, #tpu.memory_space<vmem>>, %arg6: memref<4x512xf32, #tpu.memory_space<vmem>>) attributes {dimension_semantics = [], scalar_prefetch = 0 : i64, scratch_operands = 0 : i64, tpu.core_type = #tpu.core_type<tc>} {
    %c0 = arith.constant 0 : index
    %c0_0 = arith.constant 0 : index
    %0 = vector.load %arg0[%c0, %c0_0] : memref<4x512xf32, #tpu.memory_space<vmem>>, vector<4x512xf32>
    %c17_i32 = arith.constant 17 : i32
    %1 = tpu.dynamic_rotate %0 by %c17_i32 dim 1 : vector<4x512xf32>, i32 -> vector<4x512xf32>
    %c0_1 = arith.constant 0 : index
    %c0_2 = arith.constant 0 : index
    %c0_3 = arith.constant 0 : index
    %2 = vector.load %arg1[%c0_1, %c0_2, %c0_3] : memref<9x4x512xf32, #tpu.memory_space<vmem>>, vector<1x4x512xf32>
    %3 = vector.shape_cast %2 : vector<1x4x512xf32> to vector<4x512xf32>
    %4 = arith.mulf %1, %3 : vector<4x512xf32>
    %c16_i32 = arith.constant 16 : i32
    %5 = tpu.dynamic_rotate %0 by %c16_i32 dim 1 : vector<4x512xf32>, i32 -> vector<4x512xf32>
    %c1 = arith.constant 1 : index
    %c0_4 = arith.constant 0 : index
    %c0_5 = arith.constant 0 : index
    %6 = vector.load %arg1[%c1, %c0_4, %c0_5] : memref<9x4x512xf32, #tpu.memory_space<vmem>>, vector<1x4x512xf32>
    %7 = vector.shape_cast %6 : vector<1x4x512xf32> to vector<4x512xf32>
    %8 = arith.mulf %5, %7 : vector<4x512xf32>
    %c15_i32 = arith.constant 15 : i32
    %9 = tpu.dynamic_rotate %0 by %c15_i32 dim 1 : vector<4x512xf32>, i32 -> vector<4x512xf32>
    %c2 = arith.constant 2 : index
    %c0_6 = arith.constant 0 : index
    %c0_7 = arith.constant 0 : index
    %10 = vector.load %arg1[%c2, %c0_6, %c0_7] : memref<9x4x512xf32, #tpu.memory_space<vmem>>, vector<1x4x512xf32>
    %11 = vector.shape_cast %10 : vector<1x4x512xf32> to vector<4x512xf32>
    %12 = arith.mulf %9, %11 : vector<4x512xf32>
    %c1_i32 = arith.constant 1 : i32
    %13 = tpu.dynamic_rotate %0 by %c1_i32 dim 1 : vector<4x512xf32>, i32 -> vector<4x512xf32>
    %c3 = arith.constant 3 : index
    %c0_8 = arith.constant 0 : index
    %c0_9 = arith.constant 0 : index
    %14 = vector.load %arg1[%c3, %c0_8, %c0_9] : memref<9x4x512xf32, #tpu.memory_space<vmem>>, vector<1x4x512xf32>
    %15 = vector.shape_cast %14 : vector<1x4x512xf32> to vector<4x512xf32>
    %16 = arith.mulf %13, %15 : vector<4x512xf32>
    %c511_i32 = arith.constant 511 : i32
    %17 = tpu.dynamic_rotate %0 by %c511_i32 dim 1 : vector<4x512xf32>, i32 -> vector<4x512xf32>
    %c5 = arith.constant 5 : index
    %c0_10 = arith.constant 0 : index
    %c0_11 = arith.constant 0 : index
    %18 = vector.load %arg1[%c5, %c0_10, %c0_11] : memref<9x4x512xf32, #tpu.memory_space<vmem>>, vector<1x4x512xf32>
    %19 = vector.shape_cast %18 : vector<1x4x512xf32> to vector<4x512xf32>
    %20 = arith.mulf %17, %19 : vector<4x512xf32>
    %c497_i32 = arith.constant 497 : i32
    %21 = tpu.dynamic_rotate %0 by %c497_i32 dim 1 : vector<4x512xf32>, i32 -> vector<4x512xf32>
    %c6 = arith.constant 6 : index
    %c0_12 = arith.constant 0 : index
    %c0_13 = arith.constant 0 : index
    %22 = vector.load %arg1[%c6, %c0_12, %c0_13] : memref<9x4x512xf32, #tpu.memory_space<vmem>>, vector<1x4x512xf32>
    %23 = vector.shape_cast %22 : vector<1x4x512xf32> to vector<4x512xf32>
    %24 = arith.mulf %21, %23 : vector<4x512xf32>
    %c496_i32 = arith.constant 496 : i32
    %25 = tpu.dynamic_rotate %0 by %c496_i32 dim 1 : vector<4x512xf32>, i32 -> vector<4x512xf32>
    %c7 = arith.constant 7 : index
    %c0_14 = arith.constant 0 : index
    %c0_15 = arith.constant 0 : index
    %26 = vector.load %arg1[%c7, %c0_14, %c0_15] : memref<9x4x512xf32, #tpu.memory_space<vmem>>, vector<1x4x512xf32>
    %27 = vector.shape_cast %26 : vector<1x4x512xf32> to vector<4x512xf32>
    %28 = arith.mulf %25, %27 : vector<4x512xf32>
    %c495_i32 = arith.constant 495 : i32
    %29 = tpu.dynamic_rotate %0 by %c495_i32 dim 1 : vector<4x512xf32>, i32 -> vector<4x512xf32>
    %c8 = arith.constant 8 : index
    %c0_16 = arith.constant 0 : index
    %c0_17 = arith.constant 0 : index
    %30 = vector.load %arg1[%c8, %c0_16, %c0_17] : memref<9x4x512xf32, #tpu.memory_space<vmem>>, vector<1x4x512xf32>
    %31 = vector.shape_cast %30 : vector<1x4x512xf32> to vector<4x512xf32>
    %32 = arith.mulf %29, %31 : vector<4x512xf32>
    %33 = tpu.concatenate %4, %8, %12, %16, %0, %20, %24, %28, %32 in 0 : vector<4x512xf32>, vector<4x512xf32>, vector<4x512xf32>, vector<4x512xf32>, vector<4x512xf32>, vector<4x512xf32>, vector<4x512xf32>, vector<4x512xf32>, vector<4x512xf32> -> vector<36x512xf32>
    %c0_18 = arith.constant 0 : index
    %c0_19 = arith.constant 0 : index
    %34 = vector.load %arg2[%c0_18, %c0_19] : memref<8x36xf32, #tpu.memory_space<vmem>>, vector<8x36xf32>
    %cst = arith.constant dense<0.000000e+00> : vector<8x512xf32>
    %35 = tpu.matmul %34, %33, %cst {dimension_numbers = #tpu.dot_dimension_numbers<[1], [0], [0], [1], [0, 0, 1, 1], [], []>} : vector<8x36xf32>, vector<36x512xf32>, vector<8x512xf32> -> vector<8x512xf32>
    %c0_20 = arith.constant 0 : index
    %c0_21 = arith.constant 0 : index
    %36 = vector.load %arg3[%c0_20, %c0_21] : memref<8x1xf32, #tpu.memory_space<vmem>>, vector<8x1xf32>
    %37 = vector.broadcast %36 : vector<8x1xf32> to vector<8x512xf32>
    %38 = arith.addf %35, %37 : vector<8x512xf32>
    %39 = vector.extract_strided_slice %38 {offsets = [0, 0], sizes = [4, 512], strides = [1, 1]} : vector<8x512xf32> to vector<4x512xf32>
    %40 = arith.negf %39 : vector<4x512xf32>
    %41 = math.exp %40 : vector<4x512xf32>
    %cst_22 = arith.constant 1.000000e+00 : f32
    %42 = vector.broadcast %cst_22 : f32 to vector<4x512xf32>
    %43 = arith.addf %42, %41 : vector<4x512xf32>
    %44 = arith.divf %42, %43 : vector<4x512xf32>
    %45 = arith.mulf %44, %0 : vector<4x512xf32>
    %46 = vector.extract_strided_slice %38 {offsets = [4, 0], sizes = [4, 512], strides = [1, 1]} : vector<8x512xf32> to vector<4x512xf32>
    %cst_23 = arith.constant 0.000000e+00 : f32
    %47 = vector.broadcast %cst_23 : f32 to vector<4x512xf32>
    %48 = arith.maximumf %46, %47 : vector<4x512xf32>
    %c17_i32_24 = arith.constant 17 : i32
    %49 = tpu.dynamic_rotate %48 by %c17_i32_24 dim 1 : vector<4x512xf32>, i32 -> vector<4x512xf32>
    %c0_25 = arith.constant 0 : index
    %c0_26 = arith.constant 0 : index
    %c0_27 = arith.constant 0 : index
    %50 = vector.load %arg1[%c0_25, %c0_26, %c0_27] : memref<9x4x512xf32, #tpu.memory_space<vmem>>, vector<1x4x512xf32>
    %51 = vector.shape_cast %50 : vector<1x4x512xf32> to vector<4x512xf32>
    %52 = arith.mulf %49, %51 : vector<4x512xf32>
    %c16_i32_28 = arith.constant 16 : i32
    %53 = tpu.dynamic_rotate %48 by %c16_i32_28 dim 1 : vector<4x512xf32>, i32 -> vector<4x512xf32>
    %c1_29 = arith.constant 1 : index
    %c0_30 = arith.constant 0 : index
    %c0_31 = arith.constant 0 : index
    %54 = vector.load %arg1[%c1_29, %c0_30, %c0_31] : memref<9x4x512xf32, #tpu.memory_space<vmem>>, vector<1x4x512xf32>
    %55 = vector.shape_cast %54 : vector<1x4x512xf32> to vector<4x512xf32>
    %56 = arith.mulf %53, %55 : vector<4x512xf32>
    %c15_i32_32 = arith.constant 15 : i32
    %57 = tpu.dynamic_rotate %48 by %c15_i32_32 dim 1 : vector<4x512xf32>, i32 -> vector<4x512xf32>
    %c2_33 = arith.constant 2 : index
    %c0_34 = arith.constant 0 : index
    %c0_35 = arith.constant 0 : index
    %58 = vector.load %arg1[%c2_33, %c0_34, %c0_35] : memref<9x4x512xf32, #tpu.memory_space<vmem>>, vector<1x4x512xf32>
    %59 = vector.shape_cast %58 : vector<1x4x512xf32> to vector<4x512xf32>
    %60 = arith.mulf %57, %59 : vector<4x512xf32>
    %c1_i32_36 = arith.constant 1 : i32
    %61 = tpu.dynamic_rotate %48 by %c1_i32_36 dim 1 : vector<4x512xf32>, i32 -> vector<4x512xf32>
    %c3_37 = arith.constant 3 : index
    %c0_38 = arith.constant 0 : index
    %c0_39 = arith.constant 0 : index
    %62 = vector.load %arg1[%c3_37, %c0_38, %c0_39] : memref<9x4x512xf32, #tpu.memory_space<vmem>>, vector<1x4x512xf32>
    %63 = vector.shape_cast %62 : vector<1x4x512xf32> to vector<4x512xf32>
    %64 = arith.mulf %61, %63 : vector<4x512xf32>
    %c511_i32_40 = arith.constant 511 : i32
    %65 = tpu.dynamic_rotate %48 by %c511_i32_40 dim 1 : vector<4x512xf32>, i32 -> vector<4x512xf32>
    %c5_41 = arith.constant 5 : index
    %c0_42 = arith.constant 0 : index
    %c0_43 = arith.constant 0 : index
    %66 = vector.load %arg1[%c5_41, %c0_42, %c0_43] : memref<9x4x512xf32, #tpu.memory_space<vmem>>, vector<1x4x512xf32>
    %67 = vector.shape_cast %66 : vector<1x4x512xf32> to vector<4x512xf32>
    %68 = arith.mulf %65, %67 : vector<4x512xf32>
    %c497_i32_44 = arith.constant 497 : i32
    %69 = tpu.dynamic_rotate %48 by %c497_i32_44 dim 1 : vector<4x512xf32>, i32 -> vector<4x512xf32>
    %c6_45 = arith.constant 6 : index
    %c0_46 = arith.constant 0 : index
    %c0_47 = arith.constant 0 : index
    %70 = vector.load %arg1[%c6_45, %c0_46, %c0_47] : memref<9x4x512xf32, #tpu.memory_space<vmem>>, vector<1x4x512xf32>
    %71 = vector.shape_cast %70 : vector<1x4x512xf32> to vector<4x512xf32>
    %72 = arith.mulf %69, %71 : vector<4x512xf32>
    %c496_i32_48 = arith.constant 496 : i32
    %73 = tpu.dynamic_rotate %48 by %c496_i32_48 dim 1 : vector<4x512xf32>, i32 -> vector<4x512xf32>
    %c7_49 = arith.constant 7 : index
    %c0_50 = arith.constant 0 : index
    %c0_51 = arith.constant 0 : index
    %74 = vector.load %arg1[%c7_49, %c0_50, %c0_51] : memref<9x4x512xf32, #tpu.memory_space<vmem>>, vector<1x4x512xf32>
    %75 = vector.shape_cast %74 : vector<1x4x512xf32> to vector<4x512xf32>
    %76 = arith.mulf %73, %75 : vector<4x512xf32>
    %c495_i32_52 = arith.constant 495 : i32
    %77 = tpu.dynamic_rotate %48 by %c495_i32_52 dim 1 : vector<4x512xf32>, i32 -> vector<4x512xf32>
    %c8_53 = arith.constant 8 : index
    %c0_54 = arith.constant 0 : index
    %c0_55 = arith.constant 0 : index
    %78 = vector.load %arg1[%c8_53, %c0_54, %c0_55] : memref<9x4x512xf32, #tpu.memory_space<vmem>>, vector<1x4x512xf32>
    %79 = vector.shape_cast %78 : vector<1x4x512xf32> to vector<4x512xf32>
    %80 = arith.mulf %77, %79 : vector<4x512xf32>
    %81 = tpu.concatenate %52, %56, %60, %64, %48, %68, %72, %76, %80 in 0 : vector<4x512xf32>, vector<4x512xf32>, vector<4x512xf32>, vector<4x512xf32>, vector<4x512xf32>, vector<4x512xf32>, vector<4x512xf32>, vector<4x512xf32>, vector<4x512xf32> -> vector<36x512xf32>
    %82 = tpu.concatenate %81, %45 in 0 : vector<36x512xf32>, vector<4x512xf32> -> vector<40x512xf32>
    %c0_56 = arith.constant 0 : index
    %c0_57 = arith.constant 0 : index
    %83 = vector.load %arg4[%c0_56, %c0_57] : memref<4x40xf32, #tpu.memory_space<vmem>>, vector<4x40xf32>
    %cst_58 = arith.constant dense<0.000000e+00> : vector<4x512xf32>
    %84 = tpu.matmul %83, %82, %cst_58 {dimension_numbers = #tpu.dot_dimension_numbers<[1], [0], [0], [1], [0, 0, 1, 1], [], []>} : vector<4x40xf32>, vector<40x512xf32>, vector<4x512xf32> -> vector<4x512xf32>
    %c0_59 = arith.constant 0 : index
    %c0_60 = arith.constant 0 : index
    %85 = vector.load %arg5[%c0_59, %c0_60] : memref<4x1xf32, #tpu.memory_space<vmem>>, vector<4x1xf32>
    %86 = vector.broadcast %85 : vector<4x1xf32> to vector<4x512xf32>
    %87 = arith.addf %84, %86 : vector<4x512xf32>
    %88 = arith.addf %87, %0 : vector<4x512xf32>
    %c0_61 = arith.constant 0 : index
    %c0_62 = arith.constant 0 : index
    %89 = vector.load %arg6[%c0_61, %c0_62] : memref<4x512xf32, #tpu.memory_space<vmem>>, vector<4x512xf32>
    tpu.vector_store %arg6[%c0_61, %c0_62], %88 {strides = array<i32>} : memref<4x512xf32, #tpu.memory_space<vmem>>, vector<4x512xf32>,
    return
  }
}

</mosaic_0001>

<llo_original>
// kernel: tpu_custom_call.1
$region0: #{tpu_custom_call.1}
  #allocation0 [shape = 'u32[]', space=smem, size = 0x4, offset = 0x4, fixed_abs, tag = 'smem constant byte address 0x4 - core index']
  #allocation1 [shape = 'u32[144,128]{1,0:T(1,128)}', space=vmem, size = 0x12000, scoped, tag = 'internal scratch']
  %s0 = inlined_call_operand.hbm [shape: f32[4,512], index: 0, kind: input, shape index: {}]
  %s1 = inlined_call_operand.hbm [shape: f32[9,4,512], index: 1, kind: input, shape index: {}]
  %s2 = inlined_call_operand.vmem [shape: f32[8,36], index: 2, kind: input, shape index: {}]
  %s3 = inlined_call_operand.vmem [shape: f32[8,1], index: 3, kind: input, shape index: {}]
  %s4 = inlined_call_operand.vmem [shape: f32[4,40], index: 4, kind: input, shape index: {}]
  %s5 = inlined_call_operand.vmem [shape: f32[4,1], index: 5, kind: input, shape index: {}]
  %s6 = inlined_call_operand.hbm [shape: f32[4,512], index: 6, kind: output, shape index: {}]
  %s7 = sld [smem:[#allocation0]]
  $region42: #{tpu_custom_call.1} parent=0
    _
  %s9 = ssub.s32 1, %s7
  %s10 = scalar_select 0, %s9, %s7
  $region1: #{tpu_custom_call.1} parent=0
    #allocation2 [shape = 'u8[8192]{0}', space=vmem, size = 0x2000, scoped, tag = 'input window, operand 0, single buffered']
    #allocation3 [shape = 's32[1]{0}', space=sflag, size = 0x4, scoped, tag = 'scoped memory for tpu_custom_call.1']
    #allocation4 [shape = 's32[1]{0}', space=sflag, size = 0x4, scoped, tag = 'scoped memory for tpu_custom_call.1']
    #allocation5 [shape = 'u8[73728]{0}', space=vmem, size = 0x12000, scoped, tag = 'input window, operand 1, single buffered']
    #allocation6 [shape = 's32[1]{0}', space=sflag, size = 0x4, scoped, tag = 'scoped memory for tpu_custom_call.1']
    #allocation7 [shape = 'u8[8192]{0}', space=vmem, size = 0x2000, scoped, tag = 'output window, operand 0, single buffered']
    %11 = vsyncpa [#allocation3], 0
    %12 = vsyncpa [#allocation6], 0
    %13 = vsyncpa [#allocation4], 0
    // Predicated region
    $region2: #{tpu_custom_call.1} parent=1 // pred_check
      _
    $region3: #{tpu_custom_call.1} parent=1 // pred_check_branch
      %15 = sbr.rel (0) target = $region5
    $region4: #{tpu_custom_call.1} parent=1 // pred_region
      %s17 = ssub.s32 256, 256
      %18 = vsyncadd [#allocation3], %s17
      %s20 = sshll.u32 [#allocation2], 4
      %s21 = int_to_ptr.vmem [resolvable:$true] %s20
      %23 = dma.hbm_to_vmem [thread:$0]  %s0, 256, %s21, [#allocation3]
    $region5: #{tpu_custom_call.1} parent=1 // pred_fallthru
      _
    // Predicated region
    $region6: #{tpu_custom_call.1} parent=1 // pred_check
      _
    $region7: #{tpu_custom_call.1} parent=1 // pred_check_branch
      %25 = sbr.rel (0) target = $region9
    $region8: #{tpu_custom_call.1} parent=1 // pred_region
      %s27 = ssub.s32 2304, 2304
      %28 = vsyncadd [#allocation6], %s27
      %s29 = sshll.u32 [#allocation5], 4
      %s30 = int_to_ptr.vmem [resolvable:$true] %s29
      %35 = dma.hbm_to_vmem [thread:$0]  %s1, 2304, %s30, [#allocation6], 256, 256, 16
    $region9: #{tpu_custom_call.1} parent=1 // pred_fallthru
      _
    // Predicated region
    $region10: #{tpu_custom_call.1} parent=1 // pred_check
      _
    $region11: #{tpu_custom_call.1} parent=1 // pred_check_branch
      %37 = sbr.rel (0) target = $region13
    $region12: #{tpu_custom_call.1} parent=1 // pred_region
      _
    $region13: #{tpu_custom_call.1} parent=1 // pred_fallthru
      _
    // Predicated region
    $region14: #{tpu_custom_call.1} parent=1 // pred_check
      _
    $region15: #{tpu_custom_call.1} parent=1 // pred_check_branch
      %39 = sbr.rel (0) target = $region17
    $region16: #{tpu_custom_call.1} parent=1 // pred_region
      _
    $region17: #{tpu_custom_call.1} parent=1 // pred_fallthru
      _
    // Predicated region
    $region18: #{tpu_custom_call.1} parent=1 // pred_check
      _
    $region19: #{tpu_custom_call.1} parent=1 // pred_check_branch
      %41 = sbr.rel (0) target = $region21
    $region20: #{tpu_custom_call.1} parent=1 // pred_region
      _
    $region21: #{tpu_custom_call.1} parent=1 // pred_fallthru
      _
    // Predicated region
    $region22: #{tpu_custom_call.1} parent=1 // pred_check
      _
    $region23: #{tpu_custom_call.1} parent=1 // pred_check_branch
      %43 = sbr.rel (0) target = $region25
    $region24: #{tpu_custom_call.1} parent=1 // pred_region
      _
    $region25: #{tpu_custom_call.1} parent=1 // pred_fallthru
      _
    // Predicated region
    $region26: #{tpu_custom_call.1} parent=1 // pred_check
      _
    $region27: #{tpu_custom_call.1} parent=1 // pred_check_branch
      %45 = sbr.rel (0) target = $region29
    $region28: #{tpu_custom_call.1} parent=1 // pred_region
      %46 = dma.done [#allocation3], 256
    $region29: #{tpu_custom_call.1} parent=1 // pred_fallthru
      _
    // Predicated region
    $region30: #{tpu_custom_call.1} parent=1 // pred_check
      _
    $region31: #{tpu_custom_call.1} parent=1 // pred_check_branch
      %48 = sbr.rel (0) target = $region33
    $region32: #{tpu_custom_call.1} parent=1 // pred_region
      %49 = dma.done [#allocation6], 2304
    $region33: #{tpu_custom_call.1} parent=1 // pred_fallthru
      _
    %v50 = vld [vmem:[#allocation2] sm:$0xff]
    %v51 = vld [vmem:[#allocation2 + $0x8] sm:$0xff]
    %v54 = vcombine.high %v50, %v50
    %v55 = vcombine.high %v51, %v51
    %58 = vrot.lane.b32.xlu0 %v50, 17
    %v59 = vpop.permute.xlu0 %58
    %60 = vrot.lane.b32.xlu0 %v54, 17
    %v61 = vpop.permute.xlu0 %60
    %62 = vrot.lane.b32.xlu0 %v51, 17
    %v63 = vpop.permute.xlu0 %62
    %64 = vrot.lane.b32.xlu0 %v55, 17
    %v65 = vpop.permute.xlu0 %64
    %v66 = vlaneseq
    %v67 = vand.u32 %v66, 127
    %vm68 = vcmp.lt.s32.totalorder %v67, 17
    %v69 = vsel %vm68, %v63, %v65
    %v70 = vsel %vm68, %v61, %v63
    %v71 = vsel %vm68, %v59, %v61
    %v72 = vsel %vm68, %v65, %v59
    %v73 = vld [vmem:[#allocation5] sm:$0xff]
    %v74 = vld [vmem:[#allocation5 + $0x8] sm:$0xff]
    %v77 = vcombine.high %v73, %v73
    %v78 = vcombine.high %v74, %v74
    %v81 = vmul.f32 %v72, %v73
    %v82 = vmul.f32 %v71, %v77
    %v83 = vmul.f32 %v70, %v74
    %v84 = vmul.f32 %v69, %v78
    %85 = vrot.lane.b32.xlu0 %v50, 16
    %v86 = vpop.permute.xlu0 %85
    %87 = vrot.lane.b32.xlu0 %v54, 16
    %v88 = vpop.permute.xlu0 %87
    %89 = vrot.lane.b32.xlu0 %v51, 16
    %v90 = vpop.permute.xlu0 %89
    %91 = vrot.lane.b32.xlu0 %v55, 16
    %v92 = vpop.permute.xlu0 %91
    %vm93 = vcmp.lt.s32.totalorder %v67, 16
    %v94 = vsel %vm93, %v90, %v92
    %v95 = vsel %vm93, %v88, %v90
    %v96 = vsel %vm93, %v86, %v88
    %v97 = vsel %vm93, %v92, %v86
    %s98 = scalar_lea.vmem [#allocation5], 16
    %v99 = vld [vmem:[%s98] sm:$0xff]
    %v100 = vld [vmem:[%s98 + $0x8] sm:$0xff]
    %v103 = vcombine.high %v99, %v99
    %v104 = vcombine.high %v100, %v100
    %v107 = vmul.f32 %v97, %v99
    %v108 = vmul.f32 %v96, %v103
    %v109 = vmul.f32 %v95, %v100
    %v110 = vmul.f32 %v94, %v104
    %111 = vrot.lane.b32.xlu0 %v50, 15
    %v112 = vpop.permute.xlu0 %111
    %113 = vrot.lane.b32.xlu0 %v54, 15
    %v114 = vpop.permute.xlu0 %113
    %115 = vrot.lane.b32.xlu0 %v51, 15
    %v116 = vpop.permute.xlu0 %115
    %117 = vrot.lane.b32.xlu0 %v55, 15
    %v118 = vpop.permute.xlu0 %117
    %vm119 = vcmp.lt.s32.totalorder %v67, 15
    %v120 = vsel %vm119, %v116, %v118
    %v121 = vsel %vm119, %v114, %v116
    %v122 = vsel %vm119, %v112, %v114
    %v123 = vsel %vm119, %v118, %v112
    %s124 = scalar_lea.vmem [#allocation5], 32
    %v125 = vld [vmem:[%s124] sm:$0xff]
    %v126 = vld [vmem:[%s124 + $0x8] sm:$0xff]
    %v129 = vcombine.high %v125, %v125
    %v130 = vcombine.high %v126, %v126
    %v133 = vmul.f32 %v123, %v125
    %v134 = vmul.f32 %v122, %v129
    %v135 = vmul.f32 %v121, %v126
    %v136 = vmul.f32 %v120, %v130
    %137 = vrot.lane.b32.xlu0 %v50, 1
    %v138 = vpop.permute.xlu0 %137
    %139 = vrot.lane.b32.xlu0 %v54, 1
    %v140 = vpop.permute.xlu0 %139
    %141 = vrot.lane.b32.xlu0 %v51, 1
    %v142 = vpop.permute.xlu0 %141
    %143 = vrot.lane.b32.xlu0 %v55, 1
    %v144 = vpop.permute.xlu0 %143
    %vm145 = vcmp.lt.s32.totalorder %v67, 1
    %v146 = vsel %vm145, %v142, %v144
    %v147 = vsel %vm145, %v140, %v142
    %v148 = vsel %vm145, %v138, %v140
    %v149 = vsel %vm145, %v144, %v138
    %s150 = scalar_lea.vmem [#allocation5], 48
    %v151 = vld [vmem:[%s150] sm:$0xff]
    %v152 = vld [vmem:[%s150 + $0x8] sm:$0xff]
    %v155 = vcombine.high %v151, %v151
    %v156 = vcombine.high %v152, %v152
    %v159 = vmul.f32 %v149, %v151
    %v160 = vmul.f32 %v148, %v155
    %v161 = vmul.f32 %v147, %v152
    %v162 = vmul.f32 %v146, %v156
    %163 = vrot.lane.b32.xlu0 %v50, 127
    %v164 = vpop.permute.xlu0 %163
    %165 = vrot.lane.b32.xlu0 %v54, 127
    %v166 = vpop.permute.xlu0 %165
    %167 = vrot.lane.b32.xlu0 %v51, 127
    %v168 = vpop.permute.xlu0 %167
    %169 = vrot.lane.b32.xlu0 %v55, 127
    %v170 = vpop.permute.xlu0 %169
    %vm171 = vcmp.lt.s32.totalorder %v67, 127
    %v172 = vsel %vm171, %v168, %v170
    %v173 = vsel %vm171, %v166, %v168
    %v174 = vsel %vm171, %v164, %v166
    %v175 = vsel %vm171, %v170, %v164
    %s176 = scalar_lea.vmem [#allocation5], 80
    %v177 = vld [vmem:[%s176] sm:$0xff]
    %v178 = vld [vmem:[%s176 + $0x8] sm:$0xff]
    %v181 = vcombine.high %v177, %v177
    %v182 = vcombine.high %v178, %v178
    %v185 = vmul.f32 %v174, %v177
    %v186 = vmul.f32 %v173, %v181
    %v187 = vmul.f32 %v172, %v178
    %v188 = vmul.f32 %v175, %v182
    %189 = vrot.lane.b32.xlu0 %v50, 113
    %v190 = vpop.permute.xlu0 %189
    %191 = vrot.lane.b32.xlu0 %v54, 113
    %v192 = vpop.permute.xlu0 %191
    %193 = vrot.lane.b32.xlu0 %v51, 113
    %v194 = vpop.permute.xlu0 %193
    %195 = vrot.lane.b32.xlu0 %v55, 113
    %v196 = vpop.permute.xlu0 %195
    %vm197 = vcmp.lt.s32.totalorder %v67, 113
    %v198 = vsel %vm197, %v194, %v196
    %v199 = vsel %vm197, %v192, %v194
    %v200 = vsel %vm197, %v190, %v192
    %v201 = vsel %vm197, %v196, %v190
    %s202 = scalar_lea.vmem [#allocation5], 96
    %v203 = vld [vmem:[%s202] sm:$0xff]
    %v204 = vld [vmem:[%s202 + $0x8] sm:$0xff]
    %v207 = vcombine.high %v203, %v203
    %v208 = vcombine.high %v204, %v204
    %v211 = vmul.f32 %v200, %v203
    %v212 = vmul.f32 %v199, %v207
    %v213 = vmul.f32 %v198, %v204
    %v214 = vmul.f32 %v201, %v208
    %215 = vrot.lane.b32.xlu0 %v50, 112
    %v216 = vpop.permute.xlu0 %215
    %217 = vrot.lane.b32.xlu0 %v54, 112
    %v218 = vpop.permute.xlu0 %217
    %219 = vrot.lane.b32.xlu0 %v51, 112
    %v220 = vpop.permute.xlu0 %219
    %221 = vrot.lane.b32.xlu0 %v55, 112
    %v222 = vpop.permute.xlu0 %221
    %vm223 = vcmp.lt.s32.totalorder %v67, 112
    %v224 = vsel %vm223, %v220, %v222
    %v225 = vsel %vm223, %v218, %v220
    %v226 = vsel %vm223, %v216, %v218
    %v227 = vsel %vm223, %v222, %v216
    %s228 = scalar_lea.vmem [#allocation5], 112
    %v229 = vld [vmem:[%s228] sm:$0xff]
    %v230 = vld [vmem:[%s228 + $0x8] sm:$0xff]
    %v233 = vcombine.high %v229, %v229
    %v234 = vcombine.high %v230, %v230
    %v237 = vmul.f32 %v226, %v229
    %v238 = vmul.f32 %v225, %v233
    %v239 = vmul.f32 %v224, %v230
    %v240 = vmul.f32 %v227, %v234
    %241 = vrot.lane.b32.xlu0 %v50, 111
    %v242 = vpop.permute.xlu0 %241
    %243 = vrot.lane.b32.xlu0 %v54, 111
    %v244 = vpop.permute.xlu0 %243
    %245 = vrot.lane.b32.xlu0 %v51, 111
    %v246 = vpop.permute.xlu0 %245
    %247 = vrot.lane.b32.xlu0 %v55, 111
    %v248 = vpop.permute.xlu0 %247
    %vm249 = vcmp.lt.s32.totalorder %v67, 111
    %v250 = vsel %vm249, %v246, %v248
    %v251 = vsel %vm249, %v244, %v246
    %v252 = vsel %vm249, %v242, %v244
    %v253 = vsel %vm249, %v248, %v242
    %s254 = scalar_lea.vmem [#allocation5], 128
    %v255 = vld [vmem:[%s254] sm:$0xff]
    %v256 = vld [vmem:[%s254 + $0x8] sm:$0xff]
    %v259 = vcombine.high %v255, %v255
    %v260 = vcombine.high %v256, %v256
    %v263 = vmul.f32 %v252, %v255
    %v264 = vmul.f32 %v251, %v259
    %v265 = vmul.f32 %v250, %v256
    %v266 = vmul.f32 %v253, %v260
    %v271 = vrot.slane %v107, 4
    %v272 = vrot.slane %v108, 4
    %v273 = vrot.slane %v109, 4
    %v274 = vrot.slane %v110, 4
    %v283 = vrot.slane %v159, 4
    %v284 = vrot.slane %v160, 4
    %v285 = vrot.slane %v161, 4
    %v286 = vrot.slane %v162, 4
    %v295 = vrot.slane %v185, 4
    %v296 = vrot.slane %v186, 4
    %v297 = vrot.slane %v187, 4
    %v298 = vrot.slane %v188, 4
    %v307 = vrot.slane %v237, 4
    %v308 = vrot.slane %v238, 4
    %v309 = vrot.slane %v239, 4
    %v310 = vrot.slane %v240, 4
    %vm315 = vcmask 1043456
    %v316 = vsel %vm315, %v81, %v271
    %v317 = vsel %vm315, %v82, %v272
    %v318 = vsel %vm315, %v83, %v273
    %v319 = vsel %vm315, %v84, %v274
    %v320 = vsel %vm315, %v133, %v283
    %v321 = vsel %vm315, %v134, %v284
    %v322 = vsel %vm315, %v135, %v285
    %v323 = vsel %vm315, %v136, %v286
    %v324 = vsel %vm315, %v50, %v295
    %v325 = vsel %vm315, %v54, %v296
    %v326 = vsel %vm315, %v51, %v297
    %v327 = vsel %vm315, %v55, %v298
    %v328 = vsel %vm315, %v211, %v307
    %v329 = vsel %vm315, %v212, %v308
    %v330 = vsel %vm315, %v213, %v309
    %v331 = vsel %vm315, %v214, %v310
    %v332 = vld [vmem:[%s2] sm:$0xff]
    %v333 = vld [vmem:[%s3] sm:$0xff]
    %335 = vset.pattern.permute.xlu0 0
    %336 = vperm.xlu0 %335, %v333
    %v337 = vpop.permute.xlu0 %336
    %vm339 = vcmask 293888
    %v341 = vsel %vm339, %v332, 0
    %v344 = vsel %vm315, %v263, 0
    %v347 = vsel %vm315, %v264, 0
    %v350 = vsel %vm315, %v265, 0
    %v353 = vsel %vm315, %v266, 0
    %355 = vmatprep.subr.mxu0 %v317
    %356 = vmatpush1.msra.mxu0 %v316
    %357 = vmatprep.subr.mxu0 %v321
    %358 = vmatpush1.msra.mxu0 %v320
    %359 = vmatprep.subr.mxu0 %v325
    %360 = vmatpush1.msra.mxu0 %v324
    %361 = vmatprep.subr.mxu0 %v329
    %362 = vmatpush1.msra.mxu0 %v328
    %363 = vmatprep.subr.mxu0 %v347
    %364 = vmatpush1.msra.mxu0 %v344
    %365 = vmatprep.subr.mxu0 0.0
    %366 = vmatpush1.msra.mxu0 0.0
    %367 = vmatprep.subr.mxu0 0.0
    %368 = vmatpush1.msra.mxu0 0.0
    %369 = vmatprep.subr.mxu0 0.0
    %370 = vmatpush1.msra.mxu0 0.0
    %371 = vmatprep.subr.mxu0 0.0
    %372 = vmatpush1.msra.mxu0 0.0
    %373 = vmatprep.subr.mxu0 0.0
    %374 = vmatpush1.msra.mxu0 0.0
    %375 = vmatprep.subr.mxu0 0.0
    %376 = vmatpush1.msra.mxu0 0.0
    %377 = vmatprep.subr.mxu0 0.0
    %378 = vmatpush1.msra.mxu0 0.0
    %379 = vmatprep.subr.mxu0 0.0
    %380 = vmatpush1.msra.mxu0 0.0
    %381 = vmatprep.subr.mxu0 0.0
    %382 = vmatpush1.msra.mxu0 0.0
    %383 = vmatprep.subr.mxu0 0.0
    %384 = vmatpush1.msra.mxu0 0.0
    %385 = vmatprep.subr.mxu0 0.0
    %386 = vmatpush1.msra.mxu0 0.0
    %387 = vmatprep.subr.mxu0 0.0
    %388 = vmatpush1.msra.mxu0 0.0
    %389 = vmatprep.subr.mxu0 0.0
    %390 = vmatpush1.msra.mxu0 0.0
    %391 = vmatprep.subr.mxu0 0.0
    %392 = vmatpush1.msra.mxu0 0.0
    %393 = vmatprep.subr.mxu0 0.0
    %394 = vmatpush1.msra.mxu0 0.0
    %395 = vmatprep.subr.mxu0 0.0
    %396 = vmatpush1.msra.mxu0 0.0
    %397 = vmatprep.subr.mxu0 0.0
    %398 = vmatpush1.msra.mxu0 0.0
    %399 = vmatprep.subr.mxu0 0.0
    %400 = vmatpush1.msra.mxu0 0.0
    %401 = vmatprep.subr.mxu0 0.0
    %402 = vmatpush1.msra.mxu0 0.0
    %403 = vmatprep.subr.mxu0 0.0
    %404 = vmatpush1.msra.mxu0 0.0
    %405 = vmatprep.subr.mxu0 0.0
    %406 = vmatpush1.msra.mxu0 0.0
    %407 = vmatprep.subr.mxu0 0.0
    %408 = vmatpush1.msra.mxu0 0.0
    %409 = vmatprep.subr.mxu0 0.0
    %410 = vmatpush1.msra.mxu0 0.0
    %411 = vmatprep.subr.mxu0 0.0
    %412 = vmatpush1.msra.mxu0 0.0
    %413 = vmatprep.subr.mxu0 0.0
    %414 = vmatpush1.msra.mxu0 0.0
    %415 = vmatprep.subr.mxu0 0.0
    %416 = vmatpush1.msra.mxu0 0.0
    %417 = vmatprep.subr.mxu0 0.0
    %418 = vmatpush1.msra.mxu0 0.0
    %419 = vmatprep.mubr.f32.mxu0 0.0
    %420 = vmatmul.mubr.f32.gmra.mrb[0].mxu0 %v341
    %v421 = vpop.f32.mrb[0].mxu0
    %v422 = vadd.f32 %v337, %v421
    %v423 = vpop.f32.mrb[0].mxu0
    %v424 = vadd.f32 %v337, %v423
    %425 = vdwg.mxu0
    %426 = vmatprep.subr.mxu0 %v319
    %427 = vmatpush1.msra.mxu0 %v318
    %428 = vmatprep.subr.mxu0 %v323
    %429 = vmatpush1.msra.mxu0 %v322
    %430 = vmatprep.subr.mxu0 %v327
    %431 = vmatpush1.msra.mxu0 %v326
    %432 = vmatprep.subr.mxu0 %v331
    %433 = vmatpush1.msra.mxu0 %v330
    %434 = vmatprep.subr.mxu0 %v353
    %435 = vmatpush1.msra.mxu0 %v350
    %436 = vmatprep.subr.mxu0 0.0
    %437 = vmatpush1.msra.mxu0 0.0
    %438 = vmatprep.subr.mxu0 0.0
    %439 = vmatpush1.msra.mxu0 0.0
    %440 = vmatprep.subr.mxu0 0.0
    %441 = vmatpush1.msra.mxu0 0.0
    %442 = vmatprep.subr.mxu0 0.0
    %443 = vmatpush1.msra.mxu0 0.0
    %444 = vmatprep.subr.mxu0 0.0
    %445 = vmatpush1.msra.mxu0 0.0
    %446 = vmatprep.subr.mxu0 0.0
    %447 = vmatpush1.msra.mxu0 0.0
    %448 = vmatprep.subr.mxu0 0.0
    %449 = vmatpush1.msra.mxu0 0.0
    %450 = vmatprep.subr.mxu0 0.0
    %451 = vmatpush1.msra.mxu0 0.0
    %452 = vmatprep.subr.mxu0 0.0
    %453 = vmatpush1.msra.mxu0 0.0
    %454 = vmatprep.subr.mxu0 0.0
    %455 = vmatpush1.msra.mxu0 0.0
    %456 = vmatprep.subr.mxu0 0.0
    %457 = vmatpush1.msra.mxu0 0.0
    %458 = vmatprep.subr.mxu0 0.0
    %459 = vmatpush1.msra.mxu0 0.0
    %460 = vmatprep.subr.mxu0 0.0
    %461 = vmatpush1.msra.mxu0 0.0
    %462 = vmatprep.subr.mxu0 0.0
    %463 = vmatpush1.msra.mxu0 0.0
    %464 = vmatprep.subr.mxu0 0.0
    %465 = vmatpush1.msra.mxu0 0.0
    %466 = vmatprep.subr.mxu0 0.0
    %467 = vmatpush1.msra.mxu0 0.0
    %468 = vmatprep.subr.mxu0 0.0
    %469 = vmatpush1.msra.mxu0 0.0
    %470 = vmatprep.subr.mxu0 0.0
    %471 = vmatpush1.msra.mxu0 0.0
    %472 = vmatprep.subr.mxu0 0.0
    %473 = vmatpush1.msra.mxu0 0.0
    %474 = vmatprep.subr.mxu0 0.0
    %475 = vmatpush1.msra.mxu0 0.0
    %476 = vmatprep.subr.mxu0 0.0
    %477 = vmatpush1.msra.mxu0 0.0
    %478 = vmatprep.subr.mxu0 0.0
    %479 = vmatpush1.msra.mxu0 0.0
    %480 = vmatprep.subr.mxu0 0.0
    %481 = vmatpush1.msra.mxu0 0.0
    %482 = vmatprep.subr.mxu0 0.0
    %483 = vmatpush1.msra.mxu0 0.0
    %484 = vmatprep.subr.mxu0 0.0
    %485 = vmatpush1.msra.mxu0 0.0
    %486 = vmatprep.subr.mxu0 0.0
    %487 = vmatpush1.msra.mxu0 0.0
    %488 = vmatprep.subr.mxu0 0.0
    %489 = vmatpush1.msra.mxu0 0.0
    %490 = vmatprep.mubr.f32.mxu0 0.0
    %491 = vmatmul.mubr.f32.gmra.mrb[0].mxu0 %v341
    %v492 = vpop.f32.mrb[0].mxu0
    %v493 = vadd.f32 %v337, %v492
    %v494 = vpop.f32.mrb[0].mxu0
    %v495 = vadd.f32 %v337, %v494
    %496 = vdwg.mxu0
    %v497 = vxor.u32 %v422, 2147483648
    %v498 = vxor.u32 %v424, 2147483648
    %v499 = vxor.u32 %v493, 2147483648
    %v500 = vxor.u32 %v495, 2147483648
    %v501 = vmul.f32 %v497, 1.442695
    %v502 = vpow.pop %v501
    %v503 = vmul.f32 %v498, 1.442695
    %v504 = vpow.pop %v503
    %v505 = vmul.f32 %v499, 1.442695
    %v506 = vpow.pop %v505
    %v507 = vmul.f32 %v500, 1.442695
    %v508 = vpow.pop %v507
    %v509 = vadd.f32 %v502, 1.0
    %v510 = vadd.f32 %v504, 1.0
    %v511 = vadd.f32 %v506, 1.0
    %v512 = vadd.f32 %v508, 1.0
    %v513 = vrcp.pop %v509
    %v514 = vmul.f32 1.0, %v513
    %v515 = vrcp.pop %v510
    %v516 = vmul.f32 1.0, %v515
    %v517 = vrcp.pop %v511
    %v518 = vmul.f32 1.0, %v517
    %v519 = vrcp.pop %v512
    %v520 = vmul.f32 1.0, %v519
    %v521 = vmul.f32 %v514, %v50
    %v522 = vmul.f32 %v516, %v54
    %v523 = vmul.f32 %v518, %v51
    %v524 = vmul.f32 %v520, %v55
    %v525 = vmax.f32 %v422, 0.0
    %v526 = vmax.f32 %v424, 0.0
    %v527 = vmax.f32 %v493, 0.0
    %v528 = vmax.f32 %v495, 0.0
    %v533 = vrot.slane %v525, 4
    %v534 = vrot.slane %v526, 4
    %v535 = vrot.slane %v527, 4
    %v536 = vrot.slane %v528, 4
    %541 = vrot.lane.b32.xlu0 %v533, 17
    %v542 = vpop.permute.xlu0 %541
    %543 = vrot.lane.b32.xlu0 %v534, 17
    %v544 = vpop.permute.xlu0 %543
    %545 = vrot.lane.b32.xlu0 %v535, 17
    %v546 = vpop.permute.xlu0 %545
    %547 = vrot.lane.b32.xlu0 %v536, 17
    %v548 = vpop.permute.xlu0 %547
    %v549 = vsel %vm68, %v546, %v548
    %v550 = vsel %vm68, %v544, %v546
    %v551 = vsel %vm68, %v542, %v544
    %v552 = vsel %vm68, %v548, %v542
    %v553 = vmul.f32 %v552, %v73
    %v554 = vmul.f32 %v551, %v77
    %v555 = vmul.f32 %v550, %v74
    %v556 = vmul.f32 %v549, %v78
    %557 = vrot.lane.b32.xlu0 %v533, 16
    %v558 = vpop.permute.xlu0 %557
    %559 = vrot.lane.b32.xlu0 %v534, 16
    %v560 = vpop.permute.xlu0 %559
    %561 = vrot.lane.b32.xlu0 %v535, 16
    %v562 = vpop.permute.xlu0 %561
    %563 = vrot.lane.b32.xlu0 %v536, 16
    %v564 = vpop.permute.xlu0 %563
    %v565 = vsel %vm93, %v562, %v564
    %v566 = vsel %vm93, %v560, %v562
    %v567 = vsel %vm93, %v558, %v560
    %v568 = vsel %vm93, %v564, %v558
    %v569 = vmul.f32 %v568, %v99
    %v570 = vmul.f32 %v567, %v103
    %v571 = vmul.f32 %v566, %v100
    %v572 = vmul.f32 %v565, %v104
    %573 = vrot.lane.b32.xlu0 %v533, 15
    %v574 = vpop.permute.xlu0 %573
    %575 = vrot.lane.b32.xlu0 %v534, 15
    %v576 = vpop.permute.xlu0 %575
    %577 = vrot.lane.b32.xlu0 %v535, 15
    %v578 = vpop.permute.xlu0 %577
    %579 = vrot.lane.b32.xlu0 %v536, 15
    %v580 = vpop.permute.xlu0 %579
    %v581 = vsel %vm119, %v578, %v580
    %v582 = vsel %vm119, %v576, %v578
    %v583 = vsel %vm119, %v574, %v576
    %v584 = vsel %vm119, %v580, %v574
    %v585 = vmul.f32 %v584, %v125
    %v586 = vmul.f32 %v583, %v129
    %v587 = vmul.f32 %v582, %v126
    %v588 = vmul.f32 %v581, %v130
    %589 = vrot.lane.b32.xlu0 %v533, 1
    %v590 = vpop.permute.xlu0 %589
    %591 = vrot.lane.b32.xlu0 %v534, 1
    %v592 = vpop.permute.xlu0 %591
    %593 = vrot.lane.b32.xlu0 %v535, 1
    %v594 = vpop.permute.xlu0 %593
    %595 = vrot.lane.b32.xlu0 %v536, 1
    %v596 = vpop.permute.xlu0 %595
    %v597 = vsel %vm145, %v594, %v596
    %v598 = vsel %vm145, %v592, %v594
    %v599 = vsel %vm145, %v590, %v592
    %v600 = vsel %vm145, %v596, %v590
    %v601 = vmul.f32 %v600, %v151
    %v602 = vmul.f32 %v599, %v155
    %v603 = vmul.f32 %v598, %v152
    %v604 = vmul.f32 %v597, %v156
    %605 = vrot.lane.b32.xlu0 %v533, 127
    %v606 = vpop.permute.xlu0 %605
    %607 = vrot.lane.b32.xlu0 %v534, 127
    %v608 = vpop.permute.xlu0 %607
    %609 = vrot.lane.b32.xlu0 %v535, 127
    %v610 = vpop.permute.xlu0 %609
    %611 = vrot.lane.b32.xlu0 %v536, 127
    %v612 = vpop.permute.xlu0 %611
    %v613 = vsel %vm171, %v610, %v612
    %v614 = vsel %vm171, %v608, %v610
    %v615 = vsel %vm171, %v606, %v608
    %v616 = vsel %vm171, %v612, %v606
    %v617 = vmul.f32 %v615, %v177
    %v618 = vmul.f32 %v614, %v181
    %v619 = vmul.f32 %v613, %v178
    %v620 = vmul.f32 %v616, %v182
    %621 = vrot.lane.b32.xlu0 %v533, 113
    %v622 = vpop.permute.xlu0 %621
    %623 = vrot.lane.b32.xlu0 %v534, 113
    %v624 = vpop.permute.xlu0 %623
    %625 = vrot.lane.b32.xlu0 %v535, 113
    %v626 = vpop.permute.xlu0 %625
    %627 = vrot.lane.b32.xlu0 %v536, 113
    %v628 = vpop.permute.xlu0 %627
    %v629 = vsel %vm197, %v626, %v628
    %v630 = vsel %vm197, %v624, %v626
    %v631 = vsel %vm197, %v622, %v624
    %v632 = vsel %vm197, %v628, %v622
    %v633 = vmul.f32 %v631, %v203
    %v634 = vmul.f32 %v630, %v207
    %v635 = vmul.f32 %v629, %v204
    %v636 = vmul.f32 %v632, %v208
    %637 = vrot.lane.b32.xlu0 %v533, 112
    %v638 = vpop.permute.xlu0 %637
    %639 = vrot.lane.b32.xlu0 %v534, 112
    %v640 = vpop.permute.xlu0 %639
    %641 = vrot.lane.b32.xlu0 %v535, 112
    %v642 = vpop.permute.xlu0 %641
    %643 = vrot.lane.b32.xlu0 %v536, 112
    %v644 = vpop.permute.xlu0 %643
    %v645 = vsel %vm223, %v642, %v644
    %v646 = vsel %vm223, %v640, %v642
    %v647 = vsel %vm223, %v638, %v640
    %v648 = vsel %vm223, %v644, %v638
    %v649 = vmul.f32 %v647, %v229
    %v650 = vmul.f32 %v646, %v233
    %v651 = vmul.f32 %v645, %v230
    %v652 = vmul.f32 %v648, %v234
    %653 = vrot.lane.b32.xlu0 %v533, 111
    %v654 = vpop.permute.xlu0 %653
    %655 = vrot.lane.b32.xlu0 %v534, 111
    %v656 = vpop.permute.xlu0 %655
    %657 = vrot.lane.b32.xlu0 %v535, 111
    %v658 = vpop.permute.xlu0 %657
    %659 = vrot.lane.b32.xlu0 %v536, 111
    %v660 = vpop.permute.xlu0 %659
    %v661 = vsel %vm249, %v658, %v660
    %v662 = vsel %vm249, %v656, %v658
    %v663 = vsel %vm249, %v654, %v656
    %v664 = vsel %vm249, %v660, %v654
    %v665 = vmul.f32 %v663, %v255
    %v666 = vmul.f32 %v662, %v259
    %v667 = vmul.f32 %v661, %v256
    %v668 = vmul.f32 %v664, %v260
    %v673 = vrot.slane %v569, 4
    %v674 = vrot.slane %v570, 4
    %v675 = vrot.slane %v571, 4
    %v676 = vrot.slane %v572, 4
    %v685 = vrot.slane %v601, 4
    %v686 = vrot.slane %v602, 4
    %v687 = vrot.slane %v603, 4
    %v688 = vrot.slane %v604, 4
    %v697 = vrot.slane %v617, 4
    %v698 = vrot.slane %v618, 4
    %v699 = vrot.slane %v619, 4
    %v700 = vrot.slane %v620, 4
    %v709 = vrot.slane %v649, 4
    %v710 = vrot.slane %v650, 4
    %v711 = vrot.slane %v651, 4
    %v712 = vrot.slane %v652, 4
    %v717 = vsel %vm315, %v553, %v673
    %v718 = vsel %vm315, %v554, %v674
    %v719 = vsel %vm315, %v555, %v675
    %v720 = vsel %vm315, %v556, %v676
    %v721 = vsel %vm315, %v585, %v685
    %v722 = vsel %vm315, %v586, %v686
    %v723 = vsel %vm315, %v587, %v687
    %v724 = vsel %vm315, %v588, %v688
    %v725 = vsel %vm315, %v533, %v697
    %v726 = vsel %vm315, %v534, %v698
    %v727 = vsel %vm315, %v535, %v699
    %v728 = vsel %vm315, %v536, %v700
    %v729 = vsel %vm315, %v633, %v709
    %v730 = vsel %vm315, %v634, %v710
    %v731 = vsel %vm315, %v635, %v711
    %v732 = vsel %vm315, %v636, %v712
    %v737 = vrot.slane %v521, 4
    %v738 = vrot.slane %v522, 4
    %v739 = vrot.slane %v523, 4
    %v740 = vrot.slane %v524, 4
    %v745 = vsel %vm315, %v665, %v737
    %v746 = vsel %vm315, %v666, %v738
    %v747 = vsel %vm315, %v667, %v739
    %v748 = vsel %vm315, %v668, %v740
    %v749 = vld [vmem:[%s4] sm:$0xf]
    %v750 = vld [vmem:[%s5] sm:$0xf]
    %752 = vset.pattern.permute.xlu0 0
    %753 = vperm.xlu0 %752, %v750
    %v754 = vpop.permute.xlu0 %753
    %vm756 = vcmask 326656
    %v758 = vsel %vm756, %v749, 0
    %760 = vmatprep.subr.mxu0 %v718
    %761 = vmatpush1.msra.mxu0 %v717
    %762 = vmatprep.subr.mxu0 %v722
    %763 = vmatpush1.msra.mxu0 %v721
    %764 = vmatprep.subr.mxu0 %v726
    %765 = vmatpush1.msra.mxu0 %v725
    %766 = vmatprep.subr.mxu0 %v730
    %767 = vmatpush1.msra.mxu0 %v729
    %768 = vmatprep.subr.mxu0 %v746
    %769 = vmatpush1.msra.mxu0 %v745
    %770 = vmatprep.subr.mxu0 0.0
    %771 = vmatpush1.msra.mxu0 0.0
    %772 = vmatprep.subr.mxu0 0.0
    %773 = vmatpush1.msra.mxu0 0.0
    %774 = vmatprep.subr.mxu0 0.0
    %775 = vmatpush1.msra.mxu0 0.0
    %776 = vmatprep.subr.mxu0 0.0
    %777 = vmatpush1.msra.mxu0 0.0
    %778 = vmatprep.subr.mxu0 0.0
    %779 = vmatpush1.msra.mxu0 0.0
    %780 = vmatprep.subr.mxu0 0.0
    %781 = vmatpush1.msra.mxu0 0.0
    %782 = vmatprep.subr.mxu0 0.0
    %783 = vmatpush1.msra.mxu0 0.0
    %784 = vmatprep.subr.mxu0 0.0
    %785 = vmatpush1.msra.mxu0 0.0
    %786 = vmatprep.subr.mxu0 0.0
    %787 = vmatpush1.msra.mxu0 0.0
    %788 = vmatprep.subr.mxu0 0.0
    %789 = vmatpush1.msra.mxu0 0.0
    %790 = vmatprep.subr.mxu0 0.0
    %791 = vmatpush1.msra.mxu0 0.0
    %792 = vmatprep.subr.mxu0 0.0
    %793 = vmatpush1.msra.mxu0 0.0
    %794 = vmatprep.subr.mxu0 0.0
    %795 = vmatpush1.msra.mxu0 0.0
    %796 = vmatprep.subr.mxu0 0.0
    %797 = vmatpush1.msra.mxu0 0.0
    %798 = vmatprep.subr.mxu0 0.0
    %799 = vmatpush1.msra.mxu0 0.0
    %800 = vmatprep.subr.mxu0 0.0
    %801 = vmatpush1.msra.mxu0 0.0
    %802 = vmatprep.subr.mxu0 0.0
    %803 = vmatpush1.msra.mxu0 0.0
    %804 = vmatprep.subr.mxu0 0.0
    %805 = vmatpush1.msra.mxu0 0.0
    %806 = vmatprep.subr.mxu0 0.0
    %807 = vmatpush1.msra.mxu0 0.0
    %808 = vmatprep.subr.mxu0 0.0
    %809 = vmatpush1.msra.mxu0 0.0
    %810 = vmatprep.subr.mxu0 0.0
    %811 = vmatpush1.msra.mxu0 0.0
    %812 = vmatprep.subr.mxu0 0.0
    %813 = vmatpush1.msra.mxu0 0.0
    %814 = vmatprep.subr.mxu0 0.0
    %815 = vmatpush1.msra.mxu0 0.0
    %816 = vmatprep.subr.mxu0 0.0
    %817 = vmatpush1.msra.mxu0 0.0
    %818 = vmatprep.subr.mxu0 0.0
    %819 = vmatpush1.msra.mxu0 0.0
    %820 = vmatprep.subr.mxu0 0.0
    %821 = vmatpush1.msra.mxu0 0.0
    %822 = vmatprep.subr.mxu0 0.0
    %823 = vmatpush1.msra.mxu0 0.0
    %824 = vmatprep.mubr.f32.mxu0 0.0
    %825 = vmatmul.mubr.f32.gmra.mrb[0].mxu0 %v758
    %v826 = vpop.f32.mrb[0].mxu0
    %v827 = vadd.f32 %v754, %v826
    %v828 = vpop.f32.mrb[0].mxu0
    %v829 = vadd.f32 %v754, %v828
    %830 = vdwg.mxu0
    %831 = vmatprep.subr.mxu0 %v720
    %832 = vmatpush1.msra.mxu0 %v719
    %833 = vmatprep.subr.mxu0 %v724
    %834 = vmatpush1.msra.mxu0 %v723
    %835 = vmatprep.subr.mxu0 %v728
    %836 = vmatpush1.msra.mxu0 %v727
    %837 = vmatprep.subr.mxu0 %v732
    %838 = vmatpush1.msra.mxu0 %v731
    %839 = vmatprep.subr.mxu0 %v748
    %840 = vmatpush1.msra.mxu0 %v747
    %841 = vmatprep.subr.mxu0 0.0
    %842 = vmatpush1.msra.mxu0 0.0
    %843 = vmatprep.subr.mxu0 0.0
    %844 = vmatpush1.msra.mxu0 0.0
    %845 = vmatprep.subr.mxu0 0.0
    %846 = vmatpush1.msra.mxu0 0.0
    %847 = vmatprep.subr.mxu0 0.0
    %848 = vmatpush1.msra.mxu0 0.0
    %849 = vmatprep.subr.mxu0 0.0
    %850 = vmatpush1.msra.mxu0 0.0
    %851 = vmatprep.subr.mxu0 0.0
    %852 = vmatpush1.msra.mxu0 0.0
    %853 = vmatprep.subr.mxu0 0.0
    %854 = vmatpush1.msra.mxu0 0.0
    %855 = vmatprep.subr.mxu0 0.0
    %856 = vmatpush1.msra.mxu0 0.0
    %857 = vmatprep.subr.mxu0 0.0
    %858 = vmatpush1.msra.mxu0 0.0
    %859 = vmatprep.subr.mxu0 0.0
    %860 = vmatpush1.msra.mxu0 0.0
    %861 = vmatprep.subr.mxu0 0.0
    %862 = vmatpush1.msra.mxu0 0.0
    %863 = vmatprep.subr.mxu0 0.0
    %864 = vmatpush1.msra.mxu0 0.0
    %865 = vmatprep.subr.mxu0 0.0
    %866 = vmatpush1.msra.mxu0 0.0
    %867 = vmatprep.subr.mxu0 0.0
    %868 = vmatpush1.msra.mxu0 0.0
    %869 = vmatprep.subr.mxu0 0.0
    %870 = vmatpush1.msra.mxu0 0.0
    %871 = vmatprep.subr.mxu0 0.0
    %872 = vmatpush1.msra.mxu0 0.0
    %873 = vmatprep.subr.mxu0 0.0
    %874 = vmatpush1.msra.mxu0 0.0
    %875 = vmatprep.subr.mxu0 0.0
    %876 = vmatpush1.msra.mxu0 0.0
    %877 = vmatprep.subr.mxu0 0.0
    %878 = vmatpush1.msra.mxu0 0.0
    %879 = vmatprep.subr.mxu0 0.0
    %880 = vmatpush1.msra.mxu0 0.0
    %881 = vmatprep.subr.mxu0 0.0
    %882 = vmatpush1.msra.mxu0 0.0
    %883 = vmatprep.subr.mxu0 0.0
    %884 = vmatpush1.msra.mxu0 0.0
    %885 = vmatprep.subr.mxu0 0.0
    %886 = vmatpush1.msra.mxu0 0.0
    %887 = vmatprep.subr.mxu0 0.0
    %888 = vmatpush1.msra.mxu0 0.0
    %889 = vmatprep.subr.mxu0 0.0
    %890 = vmatpush1.msra.mxu0 0.0
    %891 = vmatprep.subr.mxu0 0.0
    %892 = vmatpush1.msra.mxu0 0.0
    %893 = vmatprep.subr.mxu0 0.0
    %894 = vmatpush1.msra.mxu0 0.0
    %895 = vmatprep.mubr.f32.mxu0 0.0
    %896 = vmatmul.mubr.f32.gmra.mrb[0].mxu0 %v758
    %v897 = vpop.f32.mrb[0].mxu0
    %v898 = vadd.f32 %v754, %v897
    %v899 = vpop.f32.mrb[0].mxu0
    %v900 = vadd.f32 %v754, %v899
    %901 = vdwg.mxu0
    %v902 = vadd.f32 %v827, %v50
    %v903 = vadd.f32 %v829, %v54
    %v904 = vadd.f32 %v898, %v51
    %v905 = vadd.f32 %v900, %v55
    %v910 = vcombine.low %v902, %v903
    %v911 = vcombine.low %v904, %v905
    %914 = vst [vmem:[#allocation7] sm:$0xff] %v910
    %915 = vst [vmem:[#allocation7 + $0x8] sm:$0xff] %v911
    // Predicated region
    $region34: #{tpu_custom_call.1} parent=1 // pred_check
      _
    $region35: #{tpu_custom_call.1} parent=1 // pred_check_branch
      %917 = sbr.rel (0) target = $region37
    $region36: #{tpu_custom_call.1} parent=1 // pred_region
      %s919 = ssub.s32 256, 256
      %920 = vsyncadd [#allocation4], %s919
      %s922 = sshll.u32 [#allocation7], 4
      %s923 = int_to_ptr.vmem [resolvable:$true] %s922
      %925 = dma.vmem_to_hbm [thread:$0]  %s923, 256, %s6, [#allocation4]
    $region37: #{tpu_custom_call.1} parent=1 // pred_fallthru
      _
    // Predicated region
    $region38: #{tpu_custom_call.1} parent=1 // pred_check
      _
    $region39: #{tpu_custom_call.1} parent=1 // pred_check_branch
      %927 = sbr.rel (0) target = $region41
    $region40: #{tpu_custom_call.1} parent=1 // pred_region
      %928 = dma.done [#allocation4], 256
    $region41: #{tpu_custom_call.1} parent=1 // pred_fallthru
      _
    %929 = vsyncpa [#allocation3], 1
    %930 = vsyncpa [#allocation6], 1
    %931 = vsyncpa [#allocation4], 1

</llo_original>
